<compile_context>
chip_gen: v7x
topology: tpu7x:2x2x1
jax: 0.10.0
libtpu: 0.0.40
codegen_flags: <defaults>
</compile_context>

<pallas_src>
import jax
import jax.numpy as jnp
from jax.experimental import pallas as pl
from jax.experimental.pallas import tpu as pltpu


def _linear_relu_kernel(x_ref, w_ref, b_ref, o_ref):
    # x_ref: (tm, K), w_ref: (K, N), b_ref: (1, N), o_ref: (tm, N)
    acc = jnp.dot(x_ref[...], w_ref[...], preferred_element_type=jnp.float32)
    acc = acc + b_ref[...]                       # f32 bias broadcast over rows
    o_ref[...] = jnp.maximum(acc, 0.0).astype(o_ref.dtype)


def _round_up(x, m):
    return ((x + m - 1) // m) * m


def linear_difference_forward(
    feature, w1_t, b1, *,
    tm=8192,                 # target row tile (multiple of 16)
    out_dtype=jnp.float32,   # jnp.bfloat16 halves the dominant output stream
    min_pallas_batch=64,     # tiny batches: plain XLA beats kernel launch cost
    force_pallas=False,
):
    """feature: [B, input_bands], w1_t: [input_bands, 128] (pre-transposed), b1: [128]."""
    B, K = feature.shape
    N = w1_t.shape[1]

    # For truly tiny batches the pallas_call fixed launch + DMA priming dwarfs
    # the matmul; let XLA fuse it instead.
    if B < min_pallas_batch and not force_pallas:
        out = jnp.maximum(
            feature.astype(jnp.float32) @ w1_t.astype(jnp.float32)
            + b1.astype(jnp.float32),
            0.0,
        )
        return out.astype(out_dtype)

    b1_2d = b1.reshape(1, N).astype(jnp.float32)   # bias add stays in f32

    # Row-tile selection: biggest tile up to `tm`, but keep >= 4 grid steps
    # (>= 2 per TensorCore on v7x) so input-prefetch / output-writeback overlap
    # has a steady state. Multiple of 16 keeps bf16-output sublane packing legal.
    target_steps = 4
    if B >= target_steps * tm:
        tm_eff = tm
    else:
        tm_eff = max(16, _round_up(pl.cdiv(B, target_steps), 16))
    tm_eff = min(tm_eff, _round_up(B, 16))

    num_steps = pl.cdiv(B, tm_eff)   # ragged last block: Pallas masks OOB writes

    in_item = jnp.dtype(feature.dtype).itemsize
    out_item = jnp.dtype(out_dtype).itemsize

    cost = pl.CostEstimate(
        flops=2 * B * K * N,
        transcendentals=0,
        bytes_accessed=B * K * in_item + K * N * in_item + N * 4 + B * N * out_item,
    )

    # Per-step double-buffered VMEM footprint; only raise the scoped-VMEM limit
    # if the caller pushes tm past what the default limit covers (v5e default
    # is 16 MiB; v7x physical is 64 MiB, so cap the raise well below that).
    step_bytes = (
        2 * tm_eff * K * in_item          # feature tile, double buffered
        + 2 * tm_eff * N * out_item       # output tile, double buffered
        + 2 * (K * N * in_item + N * 4)   # resident weight + bias
    )
    cp_kwargs = dict(dimension_semantics=("parallel",))
    if step_bytes > 14 * 1024 * 1024:
        cp_kwargs["vmem_limit_bytes"] = min(step_bytes + (4 << 20), 48 << 20)

    out = pl.pallas_call(
        _linear_relu_kernel,
        out_shape=jax.ShapeDtypeStruct((B, N), out_dtype),
        grid_spec=pltpu.PrefetchScalarGridSpec(
            num_scalar_prefetch=0,
            grid=(num_steps,),
            in_specs=[
                pl.BlockSpec((tm_eff, K), lambda i: (i, 0)),   # row tile of features
                pl.BlockSpec((K, N), lambda i: (0, 0)),        # full weight, resident
                pl.BlockSpec((1, N), lambda i: (0, 0)),        # bias, resident
            ],
            out_specs=pl.BlockSpec((tm_eff, N), lambda i: (i, 0)),
        ),
        compiler_params=pltpu.CompilerParams(**cp_kwargs),
        cost_estimate=cost,
    )(feature, w1_t, b1_2d)

    return out


def init_params(key, input_bands):
    """Deterministic init mimicking nn.Linear defaults (uniform +/- 1/sqrt(fan_in))."""
    def linear_init(k, fan_in, fan_out):
        kw, kb = jax.random.split(k)
        bound = 1.0 / jnp.sqrt(fan_in)
        w = jax.random.uniform(kw, (fan_out, fan_in), jnp.float32, -bound, bound)
        b = jax.random.uniform(kb, (fan_out,), jnp.float32, -bound, bound)
        return w, b

    k1, k2, k3 = jax.random.split(key, 3)
    w1, b1 = linear_init(k1, input_bands, 128)
    w2, b2 = linear_init(k2, 128, 64)    # unused in forward (parity with __init__)
    w3, b3 = linear_init(k3, 64, 128)    # unused in forward (parity with __init__)
    return (w1, b1), (w2, b2), (w3, b3)


if __name__ == "__main__":
    key = jax.random.PRNGKey(0)
    kx, kp = jax.random.split(key)

    input_bands = 32
    (w1, b1), _, _ = init_params(kp, input_bands)
    w1_t = w1.T

    # Batch not divisible by the tile -> exercises the ragged-last-block path,
    # and is large enough to take the Pallas route (>= min_pallas_batch).
    batch = 300
    feature = jax.random.normal(kx, (batch, input_bands), jnp.float32)

    out = linear_difference_forward(feature, w1_t, b1)
    out = jax.block_until_ready(out)

    ref = jnp.maximum(feature @ w1_t + b1, 0.0)
    assert out.shape == (batch, 128)
    assert jnp.allclose(out, ref, atol=1e-5, rtol=1e-5)

    # bf16-output path (the main remaining HBM-traffic lever); looser tolerance.
    out_bf16 = jax.block_until_ready(
        linear_difference_forward(feature, w1_t, b1, out_dtype=jnp.bfloat16)
    )
    assert out_bf16.dtype == jnp.bfloat16
    assert jnp.allclose(out_bf16.astype(jnp.float32), ref, atol=5e-2, rtol=5e-2)

    # Tiny-batch path (bypasses Pallas by design) stays numerically identical.
    small = jax.random.normal(kx, (8, input_bands), jnp.float32)
    out_small = jax.block_until_ready(linear_difference_forward(small, w1_t, b1))
    ref_small = jnp.maximum(small @ w1_t + b1, 0.0)
    assert jnp.allclose(out_small, ref_small, atol=1e-5, rtol=1e-5)

    print("KERNEL_OK")
</pallas_src>

<mosaic_0001>
module attributes {stable_mosaic.version = 11 : i64} {
  func.func @_linear_relu_kernel(%arg0: i32, %arg1: memref<80x32xf32, #tpu.memory_space<vmem>>, %arg2: memref<32x128xf32, #tpu.memory_space<vmem>>, %arg3: memref<1x128xf32, #tpu.memory_space<vmem>>, %arg4: memref<80x128xf32, #tpu.memory_space<vmem>>) attributes {dimension_semantics = [#tpu.dimension_semantics<parallel>], iteration_bounds = array<i64: 4>, scalar_prefetch = 0 : i64, scratch_operands = 0 : i64, tpu.core_type = #tpu.core_type<tc>, window_params = [{transform_indices = @transform_0, window_bounds = array<i64: 80, 32>}, {pipeline_mode = #tpu.pipeline_mode<synchronous>, transform_indices = @transform_1, window_bounds = array<i64: 32, 128>}, {pipeline_mode = #tpu.pipeline_mode<synchronous>, transform_indices = @transform_2, window_bounds = array<i64: 1, 128>}, {transform_indices = @transform_3, window_bounds = array<i64: 80, 128>}]} {
    %c0 = arith.constant 0 : index
    %c0_0 = arith.constant 0 : index
    %0 = vector.load %arg1[%c0, %c0_0] : memref<80x32xf32, #tpu.memory_space<vmem>>, vector<80x32xf32>
    %c0_1 = arith.constant 0 : index
    %c0_2 = arith.constant 0 : index
    %1 = vector.load %arg2[%c0_1, %c0_2] : memref<32x128xf32, #tpu.memory_space<vmem>>, vector<32x128xf32>
    %cst = arith.constant dense<0.000000e+00> : vector<80x128xf32>
    %2 = tpu.matmul %0, %1, %cst {dimension_numbers = #tpu.dot_dimension_numbers<[1], [0], [0], [1], [0, 0, 1, 1], [], []>} : vector<80x32xf32>, vector<32x128xf32>, vector<80x128xf32> -> vector<80x128xf32>
    %c0_3 = arith.constant 0 : index
    %c0_4 = arith.constant 0 : index
    %3 = vector.load %arg3[%c0_3, %c0_4] : memref<1x128xf32, #tpu.memory_space<vmem>>, vector<1x128xf32>
    %4 = vector.broadcast %3 : vector<1x128xf32> to vector<80x128xf32>
    %5 = arith.addf %2, %4 : vector<80x128xf32>
    %cst_5 = arith.constant 0.000000e+00 : f32
    %6 = vector.broadcast %cst_5 : f32 to vector<80x128xf32>
    %7 = arith.maximumf %5, %6 : vector<80x128xf32>
    %c0_6 = arith.constant 0 : index
    %c0_7 = arith.constant 0 : index
    %8 = vector.load %arg4[%c0_6, %c0_7] : memref<80x128xf32, #tpu.memory_space<vmem>>, vector<80x128xf32>
    tpu.vector_store %arg4[%c0_6, %c0_7], %7 {strides = array<i32>} : memref<80x128xf32, #tpu.memory_space<vmem>>, vector<80x128xf32>,
    return
  }
  func.func @transform_0(%arg0: i32) -> (i32, i32) {
    %c0_i32 = arith.constant 0 : i32
    %c0_i32_0 = arith.constant 0 : i32
    return %arg0, %c0_i32 : i32, i32
  }
  func.func @transform_1(%arg0: i32) -> (i32, i32) {
    %c0_i32 = arith.constant 0 : i32
    %c0_i32_0 = arith.constant 0 : i32
    %c0_i32_1 = arith.constant 0 : i32
    return %c0_i32, %c0_i32_0 : i32, i32
  }
  func.func @transform_2(%arg0: i32) -> (i32, i32) {
    %c0_i32 = arith.constant 0 : i32
    %c0_i32_0 = arith.constant 0 : i32
    %c0_i32_1 = arith.constant 0 : i32
    return %c0_i32, %c0_i32_0 : i32, i32
  }
  func.func @transform_3(%arg0: i32) -> (i32, i32) {
    %c0_i32 = arith.constant 0 : i32
    %c0_i32_0 = arith.constant 0 : i32
    return %arg0, %c0_i32 : i32, i32
  }
}

</mosaic_0001>

<llo_original>
// kernel: tpu_custom_call.1
$region0: #{tpu_custom_call.1}
  #allocation0 [shape = 'u32[]', space=smem, size = 0x4, offset = 0x4, fixed_abs, tag = 'smem constant byte address 0x4 - core index']
  #allocation1 [shape = 'u32[144,128]{1,0:T(1,128)}', space=vmem, size = 0x12000, scoped, tag = 'internal scratch']
  %s0 = inlined_call_operand.vmem [shape: f32[300,32], index: 0, kind: input, shape index: {}]
  %s1 = inlined_call_operand.vmem [shape: f32[32,128], index: 1, kind: input, shape index: {}]
  %s2 = inlined_call_operand.vmem [shape: f32[1,128], index: 2, kind: input, shape index: {}]
  %s3 = inlined_call_operand.hbm [shape: f32[300,128], index: 3, kind: output, shape index: {}]
  %s4 = sld [smem:[#allocation0]]
  $region45: #{tpu_custom_call.1} parent=0
    _
  %s6 = ssub.s32 1, %s4
  %s7 = scalar_select 0, %s6, %s4
  $region1: #{tpu_custom_call.1} parent=0
    #allocation2 [shape = 'u8[81920]{0}', space=vmem, size = 0x14000, scoped, tag = 'output window, operand 0']
    #allocation3 [shape = 's32[2]{0}', space=sflag, size = 0x8, scoped, tag = 'scoped memory for tpu_custom_call.1']
    %8 = vsyncpa [#allocation3], 0
    %s9 = scalar_lea.sflag [#allocation3], 1
    %10 = vsyncpa %s9, 0
    loop: start=0, step=1, limit=6
    $region2: #{tpu_custom_call.1} parent=1 // loop_pre_header
      _
    $region3: #{tpu_custom_call.1} parent=1 // loop_header
      %s12 = sphi 0, %s16
      %p13 = scmp.ge.s32.totalorder %s12, 6
      %s22 = sphi 0, %s24
      %s25 = sphi 0, %s22
      %s26 = sphi 0, %s25
      %s42 = sphi 0, %s26
      %s46 = sphi 0, %s46
      %s48 = sphi 0, %s46
      %s49 = sphi 0, %s48
      %s63 = sphi 0, %s49
      %s67 = sphi 0, %s67
      %s69 = sphi 0, %s67
      %s70 = sphi 0, %s69
      %s84 = sphi 0, %s70
      %s90 = sphi 0, %s92
      %s93 = sphi 0, %s90
      %s94 = sphi 0, %s93
      %s110 = sphi 0, %s94
    $region4: #{tpu_custom_call.1} parent=1 // loop_header_branch
      %15 = sbr.rel (%p13) target = $region8
    $region5: #{tpu_custom_call.1} parent=1 // loop_body
      %s17 = ssub.s32 %s12, 1
      %s18 = ssub.s32 %s12, 2
      %s19 = sadd.s32 %s12, 1
      %s20 = ssub.s32 %s12, %s19
      %p21 = scmp.eq.s32.totalorder %s20, 0
      %s23 = sadd.s32 %s22, 1
      %s24 = scalar_select %p21, %s22, %s23
      %p27 = pneg %p21
      %p28 = scmp.eq.s32.totalorder %s12, 3
      %p29 = por %p27, %p28
      %p30 = scmp.ne.s32.totalorder %s22, %s25
      %p31 = scmp.eq.s32.totalorder %s12, 0
      %p32 = por %p30, %p31
      %p33 = scmp.ne.s32.totalorder %s22, %s25
      %p34 = scmp.eq.s32.totalorder %s17, 3
      %p35 = por %p33, %p34
      %p36 = scmp.ne.s32.totalorder %s25, %s26
      %p37 = scmp.eq.s32.totalorder %s17, 0
      %p38 = por %p36, %p37
      %p39 = scmp.ne.s32.totalorder %s25, %s26
      %p40 = scmp.eq.s32.totalorder %s18, 3
      %p41 = por %p39, %p40
      %p43 = scmp.ne.s32.totalorder %s26, %s42
      %p44 = scmp.eq.s32.totalorder %s18, 0
      %p45 = por %p43, %p44
      %s47 = sadd.s32 %s46, 1
      %p50 = scmp.eq.s32.totalorder %s12, 3
      %p51 = scmp.ne.s32.totalorder %s46, %s48
      %p52 = scmp.eq.s32.totalorder %s12, 0
      %p53 = por %p51, %p52
      %p54 = scmp.ne.s32.totalorder %s46, %s48
      %p55 = scmp.eq.s32.totalorder %s17, 3
      %p56 = por %p54, %p55
      %p57 = scmp.ne.s32.totalorder %s48, %s49
      %p58 = scmp.eq.s32.totalorder %s17, 0
      %p59 = por %p57, %p58
      %p60 = scmp.ne.s32.totalorder %s48, %s49
      %p61 = scmp.eq.s32.totalorder %s18, 3
      %p62 = por %p60, %p61
      %p64 = scmp.ne.s32.totalorder %s49, %s63
      %p65 = scmp.eq.s32.totalorder %s18, 0
      %p66 = por %p64, %p65
      %s68 = sadd.s32 %s67, 1
      %p71 = scmp.eq.s32.totalorder %s12, 3
      %p72 = scmp.ne.s32.totalorder %s67, %s69
      %p73 = scmp.eq.s32.totalorder %s12, 0
      %p74 = por %p72, %p73
      %p75 = scmp.ne.s32.totalorder %s67, %s69
      %p76 = scmp.eq.s32.totalorder %s17, 3
      %p77 = por %p75, %p76
      %p78 = scmp.ne.s32.totalorder %s69, %s70
      %p79 = scmp.eq.s32.totalorder %s17, 0
      %p80 = por %p78, %p79
      %p81 = scmp.ne.s32.totalorder %s69, %s70
      %p82 = scmp.eq.s32.totalorder %s18, 3
      %p83 = por %p81, %p82
      %p85 = scmp.ne.s32.totalorder %s70, %s84
      %p86 = scmp.eq.s32.totalorder %s18, 0
      %p87 = por %p85, %p86
      %s88 = ssub.s32 %s12, %s19
      %p89 = scmp.eq.s32.totalorder %s88, 0
      %s91 = sadd.s32 %s90, 1
      %s92 = scalar_select %p89, %s90, %s91
      %p95 = pneg %p89
      %p96 = scmp.eq.s32.totalorder %s12, 3
      %p97 = por %p95, %p96
      %p98 = scmp.ne.s32.totalorder %s90, %s93
      %p99 = scmp.eq.s32.totalorder %s12, 0
      %p100 = por %p98, %p99
      %p101 = scmp.ne.s32.totalorder %s90, %s93
      %p102 = scmp.eq.s32.totalorder %s17, 3
      %p103 = por %p101, %p102
      %p104 = scmp.ne.s32.totalorder %s93, %s94
      %p105 = scmp.eq.s32.totalorder %s17, 0
      %p106 = por %p104, %p105
      %p107 = scmp.ne.s32.totalorder %s93, %s94
      %p108 = scmp.eq.s32.totalorder %s18, 3
      %p109 = por %p107, %p108
      %p111 = scmp.ne.s32.totalorder %s94, %s110
      %p112 = scmp.eq.s32.totalorder %s18, 0
      %p113 = por %p111, %p112
      %p114 = scmp.le.s32.totalorder 1, %s12
      %p115 = scmp.lt.s32.totalorder %s12, 5
      %p116 = pnand %p114, %p115
      %p117 = pneg %p116
      // Predicated region
      $region9: #{tpu_custom_call.1} parent=5 // pred_check
        _
      $region10: #{tpu_custom_call.1} parent=5 // pred_check_branch
        %119 = sbr.rel (%p116) target = $region12
      $region11: #{tpu_custom_call.1} parent=5 // pred_region
        %s120 = ssub.s32 %s12, 1
        // Predicated region
        $region13: #{tpu_custom_call.1} parent=11 // pred_check
          %p121 = pneg %p59
        $region14: #{tpu_custom_call.1} parent=11 // pred_check_branch
          %123 = sbr.rel (%p121) target = $region16
        $region15: #{tpu_custom_call.1} parent=11 // pred_region
          _
        $region16: #{tpu_custom_call.1} parent=11 // pred_fallthru
          _
        // Predicated region
        $region17: #{tpu_custom_call.1} parent=11 // pred_check
          %p124 = pneg %p80
        $region18: #{tpu_custom_call.1} parent=11 // pred_check_branch
          %126 = sbr.rel (%p124) target = $region20
        $region19: #{tpu_custom_call.1} parent=11 // pred_region
          _
        $region20: #{tpu_custom_call.1} parent=11 // pred_fallthru
          _
      $region12: #{tpu_custom_call.1} parent=5 // pred_fallthru
        _
      %p127 = scmp.lt.s32.totalorder %s12, 4
      // Predicated region
      $region21: #{tpu_custom_call.1} parent=5 // pred_check
        %p128 = pneg %p127
      $region22: #{tpu_custom_call.1} parent=5 // pred_check_branch
        %130 = sbr.rel (%p128) target = $region24
      $region23: #{tpu_custom_call.1} parent=5 // pred_region
        // Predicated region
        $region25: #{tpu_custom_call.1} parent=23 // pred_check
          %p131 = pneg %p32
        $region26: #{tpu_custom_call.1} parent=23 // pred_check_branch
          %133 = sbr.rel (%p131) target = $region28
        $region27: #{tpu_custom_call.1} parent=23 // pred_region
          %s134 = smul.u32 10, %s12
          %s135 = ssub.s32 38, %s134
          %p136 = scmp.lt.s32.totalorder %s135, 10
          %s137 = scalar_select %p136, %s135, 10
          %s138 = smul.u32 128, %s137
          %p139 = scmp.lt.s32.totalorder %s134, 37
          %s140 = scalar_select %p139, %s134, 37
          %s141 = smul.addr %s140, 8
          %s142 = scalar_lea.vmem %s0, %s141
          %s143 = smul.u32 10, %s12
          %s144 = ssub.s32 38, %s143
          %p145 = scmp.lt.s32.totalorder %s144, 10
          %s146 = scalar_select %p145, %s144, 10
          %s147 = smul.u32 128, %s146
        $region28: #{tpu_custom_call.1} parent=23 // pred_fallthru
          _
      $region24: #{tpu_custom_call.1} parent=5 // pred_fallthru
        _
      %p148 = scmp.le.s32.totalorder 1, %s12
      %p149 = scmp.lt.s32.totalorder %s12, 5
      %p150 = pnand %p148, %p149
      %p151 = pneg %p150
      // Predicated region
      $region29: #{tpu_custom_call.1} parent=5 // pred_check
        _
      $region30: #{tpu_custom_call.1} parent=5 // pred_check_branch
        %153 = sbr.rel (%p150) target = $region32
      $region31: #{tpu_custom_call.1} parent=5 // pred_region
        %s154 = ssub.s32 %s12, 1
        %s155 = smul.u32 10, %s17
        %s156 = ssub.s32 38, %s155
        %p157 = scmp.lt.s32.totalorder %s156, 10
        %s158 = scalar_select %p157, %s156, 10
        %s159 = smul.u32 128, %s158
        %p160 = scmp.lt.s32.totalorder %s155, 37
        %s161 = scalar_select %p160, %s155, 37
        %s162 = smul.addr %s161, 8
        %s163 = scalar_lea.vmem %s0, %s162
        %p164 = pneg %p38
        %p165 = pneg %p35
        %p166 = pneg %p59
        %p167 = pneg %p56
        %p168 = pneg %p80
        %p169 = pneg %p77
        %p170 = pneg %p106
        %p171 = pneg %p103
        %s172 = sand.u32 %s93, 1
        %s173 = scalar_lea.sflag [#allocation3], %s172
        %s174 = sand.u32 %s93, 1
        %s175 = smul.addr %s174, 80
        %s176 = scalar_lea.vmem [#allocation2], %s175
        %s177 = smul.u32 10, %s17
        %s178 = ssub.s32 38, %s177
        %p179 = scmp.lt.s32.totalorder %s178, 10
        %s180 = scalar_select %p179, %s178, 10
        %s181 = smul.u32 128, %s180
        %p182 = scmp.lt.s32.totalorder %s177, 37
        %s183 = scalar_select %p182, %s177, 37
        %s184 = smul.addr %s183, 8
        %s185 = scalar_lea.vmem %s0, %s184
        %s186 = smul.u32 10, %s17
        %s187 = ssub.s32 38, %s186
        %p188 = scmp.lt.s32.totalorder %s187, 10
        %s189 = scalar_select %p188, %s187, 10
        %s190 = smul.u32 128, %s189
        %s191 = smul.u32 10, %s17
        %s192 = ssub.s32 38, %s191
        %p193 = scmp.lt.s32.totalorder %s192, 10
        %s194 = scalar_select %p193, %s192, 10
        %s195 = smul.u32 128, %s194
        %v196 = vld [vmem:[%s185] sm:$0xff]
        %v197 = vld [vmem:[%s185 + $0x8] sm:$0xff]
        %v198 = vld [vmem:[%s185 + $0x10] sm:$0xff]
        %v199 = vld [vmem:[%s185 + $0x18] sm:$0xff]
        %v200 = vld [vmem:[%s185 + $0x20] sm:$0xff]
        %v201 = vld [vmem:[%s185 + $0x28] sm:$0xff]
        %v202 = vld [vmem:[%s185 + $0x30] sm:$0xff]
        %v203 = vld [vmem:[%s185 + $0x38] sm:$0xff]
        %v204 = vld [vmem:[%s185 + $0x40] sm:$0xff]
        %v205 = vld [vmem:[%s185 + $0x48] sm:$0xff]
        %v206 = vld [vmem:[%s1] sm:$0xff]
        %v207 = vld [vmem:[%s1 + $0x8] sm:$0xff]
        %v208 = vld [vmem:[%s1 + $0x10] sm:$0xff]
        %v209 = vld [vmem:[%s1 + $0x18] sm:$0xff]
        %v210 = vld [vmem:[%s2] sm:$0x1]
        %v212 = vlaneseq
        %v213 = vshrl.u32 %v212, 7
        %v214 = vsub.s32 0, %v213
        %v215 = vrot.slane %v210, %v214
        %vm217 = vcmask 261120
        %v219 = vsel %vm217, %v196, 0
        %v222 = vsel %vm217, %v197, 0
        %v225 = vsel %vm217, %v198, 0
        %v228 = vsel %vm217, %v199, 0
        %v231 = vsel %vm217, %v200, 0
        %v234 = vsel %vm217, %v201, 0
        %v237 = vsel %vm217, %v202, 0
        %v240 = vsel %vm217, %v203, 0
        %v243 = vsel %vm217, %v204, 0
        %v246 = vsel %vm217, %v205, 0
        %248 = vmatprep.subr.mxu0 0.0
        %249 = vmatpush1.msra.mxu0 %v206
        %250 = vmatprep.subr.mxu0 0.0
        %251 = vmatpush1.msra.mxu0 %v207
        %252 = vmatprep.subr.mxu0 0.0
        %253 = vmatpush1.msra.mxu0 %v208
        %254 = vmatprep.subr.mxu0 0.0
        %255 = vmatpush1.msra.mxu0 %v209
        %256 = vmatprep.subr.mxu0 0.0
        %257 = vmatpush1.msra.mxu0 0.0
        %258 = vmatprep.subr.mxu0 0.0
        %259 = vmatpush1.msra.mxu0 0.0
        %260 = vmatprep.subr.mxu0 0.0
        %261 = vmatpush1.msra.mxu0 0.0
        %262 = vmatprep.subr.mxu0 0.0
        %263 = vmatpush1.msra.mxu0 0.0
        %264 = vmatprep.subr.mxu0 0.0
        %265 = vmatpush1.msra.mxu0 0.0
        %266 = vmatprep.subr.mxu0 0.0
        %267 = vmatpush1.msra.mxu0 0.0
        %268 = vmatprep.subr.mxu0 0.0
        %269 = vmatpush1.msra.mxu0 0.0
        %270 = vmatprep.subr.mxu0 0.0
        %271 = vmatpush1.msra.mxu0 0.0
        %272 = vmatprep.subr.mxu0 0.0
        %273 = vmatpush1.msra.mxu0 0.0
        %274 = vmatprep.subr.mxu0 0.0
        %275 = vmatpush1.msra.mxu0 0.0
        %276 = vmatprep.subr.mxu0 0.0
        %277 = vmatpush1.msra.mxu0 0.0
        %278 = vmatprep.subr.mxu0 0.0
        %279 = vmatpush1.msra.mxu0 0.0
        %280 = vmatprep.subr.mxu0 0.0
        %281 = vmatpush1.msra.mxu0 0.0
        %282 = vmatprep.subr.mxu0 0.0
        %283 = vmatpush1.msra.mxu0 0.0
        %284 = vmatprep.subr.mxu0 0.0
        %285 = vmatpush1.msra.mxu0 0.0
        %286 = vmatprep.subr.mxu0 0.0
        %287 = vmatpush1.msra.mxu0 0.0
        %288 = vmatprep.subr.mxu0 0.0
        %289 = vmatpush1.msra.mxu0 0.0
        %290 = vmatprep.subr.mxu0 0.0
        %291 = vmatpush1.msra.mxu0 0.0
        %292 = vmatprep.subr.mxu0 0.0
        %293 = vmatpush1.msra.mxu0 0.0
        %294 = vmatprep.subr.mxu0 0.0
        %295 = vmatpush1.msra.mxu0 0.0
        %296 = vmatprep.subr.mxu0 0.0
        %297 = vmatpush1.msra.mxu0 0.0
        %298 = vmatprep.subr.mxu0 0.0
        %299 = vmatpush1.msra.mxu0 0.0
        %300 = vmatprep.subr.mxu0 0.0
        %301 = vmatpush1.msra.mxu0 0.0
        %302 = vmatprep.subr.mxu0 0.0
        %303 = vmatpush1.msra.mxu0 0.0
        %304 = vmatprep.subr.mxu0 0.0
        %305 = vmatpush1.msra.mxu0 0.0
        %306 = vmatprep.subr.mxu0 0.0
        %307 = vmatpush1.msra.mxu0 0.0
        %308 = vmatprep.subr.mxu0 0.0
        %309 = vmatpush1.msra.mxu0 0.0
        %310 = vmatprep.subr.mxu0 0.0
        %311 = vmatpush1.msra.mxu0 0.0
        %312 = vmatprep.mubr.f32.mxu0 0.0
        %313 = vmatmul.mubr.f32.gmra.mrb[0].mxu0 %v219
        %v314 = vpop.f32.mrb[0].mxu0
        %v315 = vadd.f32 %v215, %v314
        %v316 = vpop.f32.mrb[0].mxu0
        %317 = vmatprep.mubr.f32.mxu0 0.0
        %318 = vmatmul.mubr.f32.gmra.mrb[0].mxu0 %v222
        %v319 = vpop.f32.mrb[0].mxu0
        %v320 = vadd.f32 %v215, %v319
        %v321 = vpop.f32.mrb[0].mxu0
        %322 = vmatprep.mubr.f32.mxu0 0.0
        %323 = vmatmul.mubr.f32.gmra.mrb[0].mxu0 %v225
        %v324 = vpop.f32.mrb[0].mxu0
        %v325 = vadd.f32 %v215, %v324
        %v326 = vpop.f32.mrb[0].mxu0
        %327 = vmatprep.mubr.f32.mxu0 0.0
        %328 = vmatmul.mubr.f32.gmra.mrb[0].mxu0 %v228
        %v329 = vpop.f32.mrb[0].mxu0
        %v330 = vadd.f32 %v215, %v329
        %v331 = vpop.f32.mrb[0].mxu0
        %332 = vmatprep.mubr.f32.mxu0 0.0
        %333 = vmatmul.mubr.f32.gmra.mrb[0].mxu0 %v231
        %v334 = vpop.f32.mrb[0].mxu0
        %v335 = vadd.f32 %v215, %v334
        %v336 = vpop.f32.mrb[0].mxu0
        %337 = vmatprep.mubr.f32.mxu0 0.0
        %338 = vmatmul.mubr.f32.gmra.mrb[0].mxu0 %v234
        %v339 = vpop.f32.mrb[0].mxu0
        %v340 = vadd.f32 %v215, %v339
        %v341 = vpop.f32.mrb[0].mxu0
        %342 = vmatprep.mubr.f32.mxu0 0.0
        %343 = vmatmul.mubr.f32.gmra.mrb[0].mxu0 %v237
        %v344 = vpop.f32.mrb[0].mxu0
        %v345 = vadd.f32 %v215, %v344
        %v346 = vpop.f32.mrb[0].mxu0
        %347 = vmatprep.mubr.f32.mxu0 0.0
        %348 = vmatmul.mubr.f32.gmra.mrb[0].mxu0 %v240
        %v349 = vpop.f32.mrb[0].mxu0
        %v350 = vadd.f32 %v215, %v349
        %v351 = vpop.f32.mrb[0].mxu0
        %352 = vmatprep.mubr.f32.mxu0 0.0
        %353 = vmatmul.mubr.f32.gmra.mrb[0].mxu0 %v243
        %v354 = vpop.f32.mrb[0].mxu0
        %v355 = vadd.f32 %v215, %v354
        %v356 = vpop.f32.mrb[0].mxu0
        %357 = vmatprep.mubr.f32.mxu0 0.0
        %358 = vmatmul.mubr.f32.gmra.mrb[0].mxu0 %v246
        %v359 = vpop.f32.mrb[0].mxu0
        %v360 = vadd.f32 %v215, %v359
        %v361 = vpop.f32.mrb[0].mxu0
        %362 = vdwg.mxu0
        %v363 = vmax.f32 %v315, 0.0
        %v364 = vmax.f32 %v320, 0.0
        %v365 = vmax.f32 %v325, 0.0
        %v366 = vmax.f32 %v330, 0.0
        %v367 = vmax.f32 %v335, 0.0
        %v368 = vmax.f32 %v340, 0.0
        %v369 = vmax.f32 %v345, 0.0
        %v370 = vmax.f32 %v350, 0.0
        %v371 = vmax.f32 %v355, 0.0
        %v372 = vmax.f32 %v360, 0.0
        %373 = vst [vmem:[%s176] sm:$0xff] %v363
        %374 = vst [vmem:[%s176 + $0x8] sm:$0xff] %v364
        %375 = vst [vmem:[%s176 + $0x10] sm:$0xff] %v365
        %376 = vst [vmem:[%s176 + $0x18] sm:$0xff] %v366
        %377 = vst [vmem:[%s176 + $0x20] sm:$0xff] %v367
        %378 = vst [vmem:[%s176 + $0x28] sm:$0xff] %v368
        %379 = vst [vmem:[%s176 + $0x30] sm:$0xff] %v369
        %380 = vst [vmem:[%s176 + $0x38] sm:$0xff] %v370
        %381 = vst [vmem:[%s176 + $0x40] sm:$0xff] %v371
        %382 = vst [vmem:[%s176 + $0x48] sm:$0xff] %v372
        %s383 = sand.u32 %s93, 1
        %s384 = scalar_lea.sflag [#allocation3], %s383
        %s385 = sand.u32 %s93, 1
        %s386 = smul.addr %s385, 80
        %s387 = scalar_lea.vmem [#allocation2], %s386
        // Predicated region
        $region33: #{tpu_custom_call.1} parent=31 // pred_check
          %p388 = pneg %p103
        $region34: #{tpu_custom_call.1} parent=31 // pred_check_branch
          %390 = sbr.rel (%p388) target = $region36
        $region35: #{tpu_custom_call.1} parent=31 // pred_region
          %s391 = smul.u32 10, %s17
          %s392 = ssub.s32 38, %s391
          %p393 = scmp.lt.s32.totalorder %s392, 10
          %s394 = scalar_select %p393, %s392, 10
          %s395 = smul.u32 128, %s394
          %s397 = ssub.s32 1280, %s395
          %398 = vsyncadd %s384, %s397
          %p399 = scmp.ne.s32.totalorder 0, %s395
          %s400 = smul.addr %s391, 128
          %s401 = scalar_lea.hbm %s3, %s400
          %s402 = smul.u32 8, %s394
          %s403 = sshll.u32 %s387, 4
          %s404 = int_to_ptr.vmem [resolvable:$true] %s403
          %s405 = sshll.u32 %s402, 4
          %409 = dma.vmem_to_hbm [thread:$0]  (%p399), %s404, %s405, %s401, %s384, 128, 128, 8
        $region36: #{tpu_custom_call.1} parent=31 // pred_fallthru
          _
      $region32: #{tpu_custom_call.1} parent=5 // pred_fallthru
        _
      %p410 = scmp.le.s32.totalorder 2, %s12
      // Predicated region
      $region37: #{tpu_custom_call.1} parent=5 // pred_check
        %p411 = pneg %p410
      $region38: #{tpu_custom_call.1} parent=5 // pred_check_branch
        %413 = sbr.rel (%p411) target = $region40
      $region39: #{tpu_custom_call.1} parent=5 // pred_region
        %s414 = ssub.s32 %s12, 2
        // Predicated region
        $region41: #{tpu_custom_call.1} parent=39 // pred_check
          %p415 = pneg %p109
        $region42: #{tpu_custom_call.1} parent=39 // pred_check_branch
          %417 = sbr.rel (%p415) target = $region44
        $region43: #{tpu_custom_call.1} parent=39 // pred_region
          %s418 = sand.u32 %s94, 1
          %s419 = scalar_lea.sflag [#allocation3], %s418
          %s420 = sand.u32 %s94, 1
          %s421 = smul.addr %s420, 80
          %s422 = scalar_lea.vmem [#allocation2], %s421
          %423 = dma.done %s419, 1280
        $region44: #{tpu_custom_call.1} parent=39 // pred_fallthru
          _
      $region40: #{tpu_custom_call.1} parent=5 // pred_fallthru
        _
    $region6: #{tpu_custom_call.1} parent=1 // loop_footer
      %s16 = sadd.s32 1, %s12
    $region7: #{tpu_custom_call.1} parent=1 // loop_footer_branch
      %11 = sbr.rel target = $region3
    $region8: #{tpu_custom_call.1} parent=1 // loop_exit
      _
    %424 = vsyncpa [#allocation3], 1
    %s425 = scalar_lea.sflag [#allocation3], 1
    %426 = vsyncpa %s425, 1

</llo_original>
